<compile_context>
chip_gen: v7x
topology: tpu7x:2x2x1
jax: 0.10.0
libtpu: 0.0.40
codegen_flags: <defaults>
</compile_context>

<pallas_src>
import functools

import jax
import jax.numpy as jnp
from jax import lax
from jax.experimental import pallas as pl
from jax.experimental.pallas import tpu as pltpu

LANE = 128
_SMALL_N_PAD = 1024                 # resident-A path: A_hat bf16 <= 2 MiB
_VMEM_LIMIT = 48 * 1024 * 1024      # fits v7x's 64 MiB; raises v5e's default


# ------------------------------ helpers -------------------------------------

def _ceil_to(x, m):
    return ((x + m - 1) // m) * m


def _pad2(a, rows, cols):
    r, c = a.shape
    return jnp.pad(a, ((0, rows - r), (0, cols - c)))


def build_norm_adj(edge_index, edge_weight, num_nodes):
    """Dense PyG gcn_norm adjacency: A_hat = D^{-1/2}(A + I)D^{-1/2}.

    A[i, j] = weight of edge j -> i; degree is the destination-side (row) sum,
    matching PyG's col-indexed degree for flow='source_to_target'.
    """
    src = edge_index[0]
    dst = edge_index[1]
    a = jnp.zeros((num_nodes, num_nodes), dtype=jnp.float32)
    a = a.at[dst, src].add(edge_weight.astype(jnp.float32))
    a = a + jnp.eye(num_nodes, dtype=jnp.float32)          # self loops, weight 1
    deg = jnp.sum(a, axis=1)
    d_inv_sqrt = jnp.where(deg > 0.0, lax.rsqrt(deg), 0.0)
    return d_inv_sqrt[:, None] * a * d_inv_sqrt[None, :]


def _masked_softmax(logits, n_real):
    """Softmax over the first n_real columns of a lane-padded logits tile."""
    col = lax.broadcasted_iota(jnp.int32, logits.shape, 1)
    logits = jnp.where(col < n_real, logits, jnp.float32(-1e30))
    m = jnp.max(logits, axis=-1, keepdims=True)
    e = jnp.exp(logits - m)
    denom = jnp.sum(e, axis=-1, keepdims=True)
    return e * pl.reciprocal(denom, approx=True)


# ------------------- fused kernel: small graphs (A resident) -----------------

def _fused_gnn_small(a_hat, x, w1, b1, w2, b2, w3, b3, *, n_clusters):
    """Single grid step; A_hat DMA'd once and reused for both GCN layers."""
    n_pad = a_hat.shape[0]
    f_in = x.shape[1]
    f1 = w1.shape[1]
    f2 = w2.shape[1]
    c = w3.shape[1]

    def kernel(a_ref, x_ref, w1_ref, b1_ref, w2_ref, b2_ref, w3_ref, b3_ref,
               o_ref):
        a = a_ref[...]
        # Layer 1: H1 = ReLU(A_hat @ (X W1) + b1)
        xw1 = jnp.dot(x_ref[...], w1_ref[...],
                      preferred_element_type=jnp.float32)
        h1 = jnp.dot(a, xw1.astype(jnp.bfloat16),
                     preferred_element_type=jnp.float32) + b1_ref[...]
        h1 = jnp.maximum(h1, 0.0).astype(jnp.bfloat16)
        # Layer 2: H2 = ReLU(A_hat @ (H1 W2) + b2)
        t = jnp.dot(h1, w2_ref[...], preferred_element_type=jnp.float32)
        h2 = jnp.dot(a, t.astype(jnp.bfloat16),
                     preferred_element_type=jnp.float32) + b2_ref[...]
        h2 = jnp.maximum(h2, 0.0).astype(jnp.bfloat16)
        # MLP head + masked softmax over the real clusters.
        logits = jnp.dot(h2, w3_ref[...],
                         preferred_element_type=jnp.float32) + b3_ref[...]
        o_ref[...] = _masked_softmax(logits, n_clusters)

    flops = 2 * n_pad * (f_in * f1 + n_pad * f1 + f1 * f2 + n_pad * f2 + f2 * c)
    bytes_accessed = (n_pad * n_pad * 2                 # A_hat read once (bf16)
                      + n_pad * f_in * 2                # X (bf16)
                      + (f_in * f1 + f1 * f2 + f2 * c) * 2
                      + (f1 + f2 + c) * 4
                      + n_pad * c * 4)                  # output (f32)

    grid_spec = pltpu.PrefetchScalarGridSpec(
        num_scalar_prefetch=0,
        grid=(1,),
        in_specs=[
            pl.BlockSpec((n_pad, n_pad), lambda i: (0, 0)),   # A_hat (resident)
            pl.BlockSpec((n_pad, f_in), lambda i: (0, 0)),    # X
            pl.BlockSpec((f_in, f1), lambda i: (0, 0)),       # W1
            pl.BlockSpec((1, f1), lambda i: (0, 0)),          # b1
            pl.BlockSpec((f1, f2), lambda i: (0, 0)),         # W2
            pl.BlockSpec((1, f2), lambda i: (0, 0)),          # b2
            pl.BlockSpec((f2, c), lambda i: (0, 0)),          # W3
            pl.BlockSpec((1, c), lambda i: (0, 0)),           # b3
        ],
        out_specs=pl.BlockSpec((n_pad, c), lambda i: (0, 0)),
    )

    return pl.pallas_call(
        kernel,
        out_shape=jax.ShapeDtypeStruct((n_pad, c), jnp.float32),
        grid_spec=grid_spec,
        compiler_params=pltpu.CompilerParams(
            dimension_semantics=("arbitrary",),
            vmem_limit_bytes=_VMEM_LIMIT),
        cost_estimate=pl.CostEstimate(
            flops=flops, transcendentals=n_pad * c,
            bytes_accessed=bytes_accessed),
    )(a_hat, x, w1, b1, w2, b2, w3, b3)


# ---------------- fused kernel: blocked (large graphs, streamed A) -----------

def _fused_gnn_blocked(a_hat, x, w1, b1, w2, b2, w3, b3, *, n_clusters, tm=128):
    """Grid over 128-row blocks of A_hat; layer-2 aggregation accumulated in
    VMEM across the grid (reduction axis -> "arbitrary")."""
    n_pad = a_hat.shape[0]
    f_in = x.shape[1]
    f1 = w1.shape[1]
    f2 = w2.shape[1]
    c = w3.shape[1]
    n_blocks = n_pad // tm

    def kernel(a_row_ref, a_col_ref, x_ref, w1_ref, b1_ref,
               w2_ref, b2_ref, w3_ref, b3_ref,
               o_ref, xw1_ref, acc2_ref):
        j = pl.program_id(0)

        @pl.when(j == 0)
        def _init():
            # Layer-1 feature transform, computed once, kept resident (bf16).
            xw1_ref[...] = jnp.dot(
                x_ref[...], w1_ref[...],
                preferred_element_type=jnp.float32).astype(jnp.bfloat16)
            acc2_ref[...] = jnp.zeros_like(acc2_ref)

        # Layer 1 for this row block (bias added AFTER aggregation: GCNConv
        # semantics; A_hat rows do not sum to 1 so it can't be folded in).
        h1 = jnp.dot(a_row_ref[...], xw1_ref[...],
                     preferred_element_type=jnp.float32) + b1_ref[...]
        h1 = jnp.maximum(h1, 0.0).astype(jnp.bfloat16)

        # Layer-2 partial aggregation: acc2 += A_hat[:, blk] @ (H1[blk] @ W2).
        t = jnp.dot(h1, w2_ref[...],
                    preferred_element_type=jnp.float32).astype(jnp.bfloat16)
        acc2_ref[...] += jnp.dot(a_col_ref[...], t,
                                 preferred_element_type=jnp.float32)

        @pl.when(j == pl.num_programs(0) - 1)
        def _finalize():
            h2 = jnp.maximum(acc2_ref[...] + b2_ref[...], 0.0)
            logits = jnp.dot(h2.astype(jnp.bfloat16), w3_ref[...],
                             preferred_element_type=jnp.float32) + b3_ref[...]
            o_ref[...] = _masked_softmax(logits, n_clusters)

    flops = 2 * n_pad * (f_in * f1 + n_pad * f1 + f1 * f2 + n_pad * f2 + f2 * c)
    bytes_accessed = (2 * n_pad * n_pad * 2             # A_hat read twice (bf16)
                      + n_pad * f_in * 2
                      + (f_in * f1 + f1 * f2 + f2 * c) * 2
                      + (f1 + f2 + c) * 4
                      + n_pad * c * 4)

    grid_spec = pltpu.PrefetchScalarGridSpec(
        num_scalar_prefetch=0,
        grid=(n_blocks,),
        in_specs=[
            pl.BlockSpec((tm, n_pad), lambda j: (j, 0)),     # A_hat row block
            pl.BlockSpec((n_pad, tm), lambda j: (0, j)),     # A_hat col block
            pl.BlockSpec((n_pad, f_in), lambda j: (0, 0)),   # X (resident)
            pl.BlockSpec((f_in, f1), lambda j: (0, 0)),      # W1
            pl.BlockSpec((1, f1), lambda j: (0, 0)),         # b1
            pl.BlockSpec((f1, f2), lambda j: (0, 0)),        # W2
            pl.BlockSpec((1, f2), lambda j: (0, 0)),         # b2
            pl.BlockSpec((f2, c), lambda j: (0, 0)),         # W3
            pl.BlockSpec((1, c), lambda j: (0, 0)),          # b3
        ],
        out_specs=pl.BlockSpec((n_pad, c), lambda j: (0, 0)),
        scratch_shapes=[
            pltpu.VMEM((n_pad, f1), jnp.bfloat16),   # X @ W1 (bf16 for MXU)
            pltpu.VMEM((n_pad, f2), jnp.float32),    # layer-2 pre-act accumulator
        ],
    )

    return pl.pallas_call(
        kernel,
        out_shape=jax.ShapeDtypeStruct((n_pad, c), jnp.float32),
        grid_spec=grid_spec,
        compiler_params=pltpu.CompilerParams(
            dimension_semantics=("arbitrary",),      # grid carries a reduction
            vmem_limit_bytes=_VMEM_LIMIT),
        cost_estimate=pl.CostEstimate(
            flops=flops, transcendentals=n_pad * c,
            bytes_accessed=bytes_accessed),
    )(a_hat, a_hat, x, w1, b1, w2, b2, w3, b3)


# ------------------------------ JAX wrapper ----------------------------------

def init_params(key, in_channels, mp_units, n_clusters):
    dims = [in_channels] + list(mp_units)
    params = {"gcn": [], "mlp": None}
    for i in range(len(mp_units)):
        key, kw, kb = jax.random.split(key, 3)
        fan_in, fan_out = dims[i], dims[i + 1]
        scale = 1.0 / jnp.sqrt(jnp.float32(fan_in))
        w = jax.random.uniform(kw, (fan_in, fan_out), jnp.float32, -scale, scale)
        b = jax.random.uniform(kb, (1, fan_out), jnp.float32, -scale, scale)
        params["gcn"].append((w, b))
    key, kw, kb = jax.random.split(key, 3)
    fan_in = mp_units[-1]
    scale = 1.0 / jnp.sqrt(jnp.float32(fan_in))
    w = jax.random.uniform(kw, (fan_in, n_clusters), jnp.float32, -scale, scale)
    b = jax.random.uniform(kb, (1, n_clusters), jnp.float32, -scale, scale)
    params["mlp"] = (w, b)
    return params


def net_forward(params, x, edge_index, edge_weight, *, n_clusters, tm=128,
                force_blocked=False):
    # TODO(synk): the fused single-pass kernel supports exactly 2 message-passing
    # layers (as instantiated here); >2 layers would need chained calls or a
    # multi-phase grid.
    assert len(params["gcn"]) == 2

    n, f_in = x.shape
    a_hat = build_norm_adj(edge_index, edge_weight, n)

    (w1, b1), (w2, b2) = params["gcn"]
    w3, b3 = params["mlp"]

    n_pad = _ceil_to(max(n, tm), tm)
    f_in_p = _ceil_to(f_in, LANE)
    f1_p = _ceil_to(w1.shape[1], LANE)
    f2_p = _ceil_to(w2.shape[1], LANE)
    c_p = _ceil_to(w3.shape[1], LANE)

    # Lane-dense, bf16 operands for the MXU (f32 accumulation in-kernel).
    a_p = _pad2(a_hat, n_pad, n_pad).astype(jnp.bfloat16)
    x_p = _pad2(x.astype(jnp.float32), n_pad, f_in_p).astype(jnp.bfloat16)
    w1_p = _pad2(w1, f_in_p, f1_p).astype(jnp.bfloat16)
    b1_p = _pad2(b1, 1, f1_p)
    w2_p = _pad2(w2, f1_p, f2_p).astype(jnp.bfloat16)
    b2_p = _pad2(b2, 1, f2_p)
    w3_p = _pad2(w3, f2_p, c_p).astype(jnp.bfloat16)
    b3_p = _pad2(b3, 1, c_p)

    if (not force_blocked) and n_pad <= _SMALL_N_PAD:
        s = _fused_gnn_small(a_p, x_p, w1_p, b1_p, w2_p, b2_p, w3_p, b3_p,
                             n_clusters=n_clusters)
    else:
        s = _fused_gnn_blocked(a_p, x_p, w1_p, b1_p, w2_p, b2_p, w3_p, b3_p,
                               n_clusters=n_clusters, tm=tm)
    return s[:n, :n_clusters]


def net_forward_ref(params, x, edge_index, edge_weight):
    """Pure-JAX f32 reference (same math, no padding/bf16)."""
    a_hat = build_norm_adj(edge_index, edge_weight, x.shape[0])
    h = x.astype(jnp.float32)
    for (w, b) in params["gcn"]:
        h = jax.nn.relu(a_hat @ (h @ w) + b)
    w, b = params["mlp"]
    return jax.nn.softmax(h @ w + b, axis=-1)


# --------------------------------- main --------------------------------------

def _ring_graph(key, n):
    idx = jnp.arange(n, dtype=jnp.int32)
    src = jnp.concatenate([idx, (idx + 1) % n])
    dst = jnp.concatenate([(idx + 1) % n, idx])
    edge_index = jnp.stack([src, dst], axis=0)                 # (2, 2n)
    edge_weight = jax.random.uniform(key, (2 * n,), jnp.float32, 0.5, 1.5)
    return edge_index, edge_weight


def _check(s, s_ref, n, n_clusters):
    assert s.shape == (n, n_clusters)
    assert bool(jnp.all(jnp.isfinite(s)))
    # Softmax rows sum to 1 (approx reciprocal -> loose tolerance).
    assert bool(jnp.all(jnp.abs(jnp.sum(s, axis=-1) - 1.0) < 1e-2))
    # Cross-check against the f32 pure-JAX reference (bf16 MXU tolerance).
    assert bool(jnp.max(jnp.abs(s - s_ref)) < 5e-2)


if __name__ == "__main__":
    N = 16            # number of graph nodes
    IN_CHANNELS = 8
    MP_UNITS = [32, 16]
    N_CLUSTERS = 4

    key = jax.random.PRNGKey(0)
    key, kx, ke = jax.random.split(key, 3)

    x = jax.random.normal(kx, (N, IN_CHANNELS), dtype=jnp.float32)
    edge_index, edge_weight = _ring_graph(ke, N)
    params = init_params(key, IN_CHANNELS, MP_UNITS, N_CLUSTERS)

    # 1) default path (resident-A fast kernel).
    fwd = jax.jit(functools.partial(net_forward, n_clusters=N_CLUSTERS))
    s = fwd(params, x, edge_index, edge_weight)
    jax.block_until_ready(s)
    s_ref = net_forward_ref(params, x, edge_index, edge_weight)
    _check(s, s_ref, N, N_CLUSTERS)

    # 2) blocked path, single row block (same shapes).
    fwd_blk = jax.jit(functools.partial(net_forward, n_clusters=N_CLUSTERS,
                                        force_blocked=True))
    s_blk = fwd_blk(params, x, edge_index, edge_weight)
    jax.block_until_ready(s_blk)
    _check(s_blk, s_ref, N, N_CLUSTERS)

    # 3) blocked path, multi-block accumulation (n_pad = 256 -> 2 row blocks).
    N2 = 200
    key, kx2, ke2 = jax.random.split(key, 3)
    x2 = jax.random.normal(kx2, (N2, IN_CHANNELS), dtype=jnp.float32)
    edge_index2, edge_weight2 = _ring_graph(ke2, N2)
    s2 = fwd_blk(params, x2, edge_index2, edge_weight2)
    jax.block_until_ready(s2)
    s2_ref = net_forward_ref(params, x2, edge_index2, edge_weight2)
    _check(s2, s2_ref, N2, N_CLUSTERS)

    print("KERNEL_OK")
</pallas_src>

<mosaic_0001>
module attributes {stable_mosaic.version = 11 : i64} {
  func.func private @main(%arg0: i32) attributes {dimension_semantics = [#tpu.dimension_semantics<core_parallel>], iteration_bounds = array<i64: 2>, tpu.core_type = #tpu.core_type<sc_scalar_subcore>, window_params = []} {
    return
  }
}

module attributes {stable_mosaic.version = 11 : i64} {
  func.func private @main(%arg0: i32) attributes {dimension_semantics = [#tpu.dimension_semantics<core_parallel>], iteration_bounds = array<i64: 2>, tpu.core_type = #tpu.core_type<sc_scalar_subcore>, window_params = []} {
    return
  }
}

module attributes {stable_mosaic.version = 11 : i64} {
  func.func @kernel(%arg0: i32, %arg1: memref<128x128xbf16, #tpu.memory_space<vmem>>, %arg2: memref<128x128xbf16, #tpu.memory_space<vmem>>, %arg3: memref<128x128xbf16, #tpu.memory_space<vmem>>, %arg4: memref<1x128xf32, #tpu.memory_space<vmem>>, %arg5: memref<128x128xbf16, #tpu.memory_space<vmem>>, %arg6: memref<1x128xf32, #tpu.memory_space<vmem>>, %arg7: memref<128x128xbf16, #tpu.memory_space<vmem>>, %arg8: memref<1x128xf32, #tpu.memory_space<vmem>>, %arg9: memref<128x128xf32, #tpu.memory_space<vmem>>) attributes {dimension_semantics = [#tpu.dimension_semantics<arbitrary>], iteration_bounds = array<i64: 1>, scalar_prefetch = 0 : i64, scratch_operands = 0 : i64, tpu.core_type = #tpu.core_type<tc>, window_params = [{pipeline_mode = #tpu.pipeline_mode<synchronous>, transform_indices = @transform_0, window_bounds = array<i64: 128, 128>}, {pipeline_mode = #tpu.pipeline_mode<synchronous>, transform_indices = @transform_1, window_bounds = array<i64: 128, 128>}, {pipeline_mode = #tpu.pipeline_mode<synchronous>, transform_indices = @transform_2, window_bounds = array<i64: 128, 128>}, {pipeline_mode = #tpu.pipeline_mode<synchronous>, transform_indices = @transform_3, window_bounds = array<i64: 1, 128>}, {pipeline_mode = #tpu.pipeline_mode<synchronous>, transform_indices = @transform_4, window_bounds = array<i64: 128, 128>}, {pipeline_mode = #tpu.pipeline_mode<synchronous>, transform_indices = @transform_5, window_bounds = array<i64: 1, 128>}, {pipeline_mode = #tpu.pipeline_mode<synchronous>, transform_indices = @transform_6, window_bounds = array<i64: 128, 128>}, {pipeline_mode = #tpu.pipeline_mode<synchronous>, transform_indices = @transform_7, window_bounds = array<i64: 1, 128>}, {pipeline_mode = #tpu.pipeline_mode<synchronous>, transform_indices = @transform_8, window_bounds = array<i64: 128, 128>}]} {
    %c0 = arith.constant 0 : index
    %c0_0 = arith.constant 0 : index
    %0 = vector.load %arg1[%c0, %c0_0] : memref<128x128xbf16, #tpu.memory_space<vmem>>, vector<128x128xbf16>
    %c0_1 = arith.constant 0 : index
    %c0_2 = arith.constant 0 : index
    %1 = vector.load %arg2[%c0_1, %c0_2] : memref<128x128xbf16, #tpu.memory_space<vmem>>, vector<128x128xbf16>
    %c0_3 = arith.constant 0 : index
    %c0_4 = arith.constant 0 : index
    %2 = vector.load %arg3[%c0_3, %c0_4] : memref<128x128xbf16, #tpu.memory_space<vmem>>, vector<128x128xbf16>
    %cst = arith.constant dense<0.000000e+00> : vector<128x128xf32>
    %3 = tpu.matmul %1, %2, %cst {dimension_numbers = #tpu.dot_dimension_numbers<[1], [0], [0], [1], [0, 0, 1, 1], [], []>} : vector<128x128xbf16>, vector<128x128xbf16>, vector<128x128xf32> -> vector<128x128xf32>
    %4 = arith.truncf %3 : vector<128x128xf32> to vector<128x128xbf16>
    %cst_5 = arith.constant dense<0.000000e+00> : vector<128x128xf32>
    %5 = tpu.matmul %0, %4, %cst_5 {dimension_numbers = #tpu.dot_dimension_numbers<[1], [0], [0], [1], [0, 0, 1, 1], [], []>} : vector<128x128xbf16>, vector<128x128xbf16>, vector<128x128xf32> -> vector<128x128xf32>
    %c0_6 = arith.constant 0 : index
    %c0_7 = arith.constant 0 : index
    %6 = vector.load %arg4[%c0_6, %c0_7] : memref<1x128xf32, #tpu.memory_space<vmem>>, vector<1x128xf32>
    %7 = vector.broadcast %6 : vector<1x128xf32> to vector<128x128xf32>
    %8 = arith.addf %5, %7 : vector<128x128xf32>
    %cst_8 = arith.constant 0.000000e+00 : f32
    %9 = vector.broadcast %cst_8 : f32 to vector<128x128xf32>
    %10 = arith.maximumf %8, %9 : vector<128x128xf32>
    %11 = arith.truncf %10 : vector<128x128xf32> to vector<128x128xbf16>
    %c0_9 = arith.constant 0 : index
    %c0_10 = arith.constant 0 : index
    %12 = vector.load %arg5[%c0_9, %c0_10] : memref<128x128xbf16, #tpu.memory_space<vmem>>, vector<128x128xbf16>
    %cst_11 = arith.constant dense<0.000000e+00> : vector<128x128xf32>
    %13 = tpu.matmul %11, %12, %cst_11 {dimension_numbers = #tpu.dot_dimension_numbers<[1], [0], [0], [1], [0, 0, 1, 1], [], []>} : vector<128x128xbf16>, vector<128x128xbf16>, vector<128x128xf32> -> vector<128x128xf32>
    %14 = arith.truncf %13 : vector<128x128xf32> to vector<128x128xbf16>
    %cst_12 = arith.constant dense<0.000000e+00> : vector<128x128xf32>
    %15 = tpu.matmul %0, %14, %cst_12 {dimension_numbers = #tpu.dot_dimension_numbers<[1], [0], [0], [1], [0, 0, 1, 1], [], []>} : vector<128x128xbf16>, vector<128x128xbf16>, vector<128x128xf32> -> vector<128x128xf32>
    %c0_13 = arith.constant 0 : index
    %c0_14 = arith.constant 0 : index
    %16 = vector.load %arg6[%c0_13, %c0_14] : memref<1x128xf32, #tpu.memory_space<vmem>>, vector<1x128xf32>
    %17 = vector.broadcast %16 : vector<1x128xf32> to vector<128x128xf32>
    %18 = arith.addf %15, %17 : vector<128x128xf32>
    %cst_15 = arith.constant 0.000000e+00 : f32
    %19 = vector.broadcast %cst_15 : f32 to vector<128x128xf32>
    %20 = arith.maximumf %18, %19 : vector<128x128xf32>
    %21 = arith.truncf %20 : vector<128x128xf32> to vector<128x128xbf16>
    %c0_16 = arith.constant 0 : index
    %c0_17 = arith.constant 0 : index
    %22 = vector.load %arg7[%c0_16, %c0_17] : memref<128x128xbf16, #tpu.memory_space<vmem>>, vector<128x128xbf16>
    %cst_18 = arith.constant dense<0.000000e+00> : vector<128x128xf32>
    %23 = tpu.matmul %21, %22, %cst_18 {dimension_numbers = #tpu.dot_dimension_numbers<[1], [0], [0], [1], [0, 0, 1, 1], [], []>} : vector<128x128xbf16>, vector<128x128xbf16>, vector<128x128xf32> -> vector<128x128xf32>
    %c0_19 = arith.constant 0 : index
    %c0_20 = arith.constant 0 : index
    %24 = vector.load %arg8[%c0_19, %c0_20] : memref<1x128xf32, #tpu.memory_space<vmem>>, vector<1x128xf32>
    %25 = vector.broadcast %24 : vector<1x128xf32> to vector<128x128xf32>
    %26 = arith.addf %23, %25 : vector<128x128xf32>
    %27 = tpu.iota {dimensions = array<i32: 1>} : vector<128x128xi32>
    %c4_i32 = arith.constant 4 : i32
    %28 = vector.broadcast %c4_i32 : i32 to vector<128x128xi32>
    %29 = arith.cmpi slt, %27, %28 : vector<128x128xi32>
    %cst_21 = arith.constant -1.000000e+30 : f32
    %30 = vector.broadcast %cst_21 : f32 to vector<128x128xf32>
    %31 = arith.select %29, %26, %30 : vector<128x128xi1>, vector<128x128xf32>
    %cst_22 = arith.constant dense<0xFF800000> : vector<128xf32>
    %32 = vector.multi_reduction <maximumf>, %31, %cst_22 [1] : vector<128x128xf32> to vector<128xf32>
    %33 = vector.shape_cast %32 : vector<128xf32> to vector<128x1xf32>
    %34 = vector.broadcast %33 : vector<128x1xf32> to vector<128x128xf32>
    %35 = arith.subf %31, %34 : vector<128x128xf32>
    %36 = math.exp %35 : vector<128x128xf32>
    %cst_23 = arith.constant dense<0.000000e+00> : vector<128xf32>
    %37 = vector.multi_reduction <add>, %36, %cst_23 [1] : vector<128x128xf32> to vector<128xf32>
    %38 = vector.shape_cast %37 : vector<128xf32> to vector<128x1xf32>
    %39 = tpu.reciprocal %38 {approx = true} : vector<128x1xf32> -> vector<128x1xf32>
    %40 = vector.broadcast %39 : vector<128x1xf32> to vector<128x128xf32>
    %41 = arith.mulf %36, %40 : vector<128x128xf32>
    %c0_24 = arith.constant 0 : index
    %c0_25 = arith.constant 0 : index
    %42 = vector.load %arg9[%c0_24, %c0_25] : memref<128x128xf32, #tpu.memory_space<vmem>>, vector<128x128xf32>
    tpu.vector_store %arg9[%c0_24, %c0_25], %41 {strides = array<i32>} : memref<128x128xf32, #tpu.memory_space<vmem>>, vector<128x128xf32>,
    return
  }
  func.func @transform_0(%arg0: i32) -> (i32, i32) {
    %c0_i32 = arith.constant 0 : i32
    %c0_i32_0 = arith.constant 0 : i32
    %c0_i32_1 = arith.constant 0 : i32
    return %c0_i32, %c0_i32_0 : i32, i32
  }
  func.func @transform_1(%arg0: i32) -> (i32, i32) {
    %c0_i32 = arith.constant 0 : i32
    %c0_i32_0 = arith.constant 0 : i32
    %c0_i32_1 = arith.constant 0 : i32
    return %c0_i32, %c0_i32_0 : i32, i32
  }
  func.func @transform_2(%arg0: i32) -> (i32, i32) {
    %c0_i32 = arith.constant 0 : i32
    %c0_i32_0 = arith.constant 0 : i32
    %c0_i32_1 = arith.constant 0 : i32
    return %c0_i32, %c0_i32_0 : i32, i32
  }
  func.func @transform_3(%arg0: i32) -> (i32, i32) {
    %c0_i32 = arith.constant 0 : i32
    %c0_i32_0 = arith.constant 0 : i32
    %c0_i32_1 = arith.constant 0 : i32
    return %c0_i32, %c0_i32_0 : i32, i32
  }
  func.func @transform_4(%arg0: i32) -> (i32, i32) {
    %c0_i32 = arith.constant 0 : i32
    %c0_i32_0 = arith.constant 0 : i32
    %c0_i32_1 = arith.constant 0 : i32
    return %c0_i32, %c0_i32_0 : i32, i32
  }
  func.func @transform_5(%arg0: i32) -> (i32, i32) {
    %c0_i32 = arith.constant 0 : i32
    %c0_i32_0 = arith.constant 0 : i32
    %c0_i32_1 = arith.constant 0 : i32
    return %c0_i32, %c0_i32_0 : i32, i32
  }
  func.func @transform_6(%arg0: i32) -> (i32, i32) {
    %c0_i32 = arith.constant 0 : i32
    %c0_i32_0 = arith.constant 0 : i32
    %c0_i32_1 = arith.constant 0 : i32
    return %c0_i32, %c0_i32_0 : i32, i32
  }
  func.func @transform_7(%arg0: i32) -> (i32, i32) {
    %c0_i32 = arith.constant 0 : i32
    %c0_i32_0 = arith.constant 0 : i32
    %c0_i32_1 = arith.constant 0 : i32
    return %c0_i32, %c0_i32_0 : i32, i32
  }
  func.func @transform_8(%arg0: i32) -> (i32, i32) {
    %c0_i32 = arith.constant 0 : i32
    %c0_i32_0 = arith.constant 0 : i32
    %c0_i32_1 = arith.constant 0 : i32
    return %c0_i32, %c0_i32_0 : i32, i32
  }
}

</mosaic_0001>

<llo_original>
// kernel: net_forward.1
$region0: #{net_forward.1}
  #allocation0 [shape = 'u32[]', space=smem, size = 0x4, offset = 0x4, fixed_abs, tag = 'smem constant byte address 0x4 - core index']
  #allocation1 [shape = 'u32[144,128]{1,0:T(1,128)}', space=vmem, size = 0x12000, scoped, tag = 'internal scratch']
  %s0 = inlined_call_operand.vmem [shape: bf16[128,128], index: 0, kind: input, shape index: {}]
  %s1 = inlined_call_operand.vmem [shape: bf16[128,128], index: 1, kind: input, shape index: {}]
  %s2 = inlined_call_operand.vmem [shape: bf16[128,128], index: 2, kind: input, shape index: {}]
  %s3 = inlined_call_operand.vmem [shape: f32[1,128], index: 3, kind: input, shape index: {}]
  %s4 = inlined_call_operand.vmem [shape: bf16[128,128], index: 4, kind: input, shape index: {}]
  %s5 = inlined_call_operand.vmem [shape: f32[1,128], index: 5, kind: input, shape index: {}]
  %s6 = inlined_call_operand.vmem [shape: bf16[128,128], index: 6, kind: input, shape index: {}]
  %s7 = inlined_call_operand.vmem [shape: f32[1,128], index: 7, kind: input, shape index: {}]
  %s8 = inlined_call_operand.vmem [shape: f32[128,128], index: 8, kind: output, shape index: {}]
  %s9 = sld [smem:[#allocation0]]
  $region42: #{net_forward.1} parent=0
    _
  %s11 = ssub.s32 1, %s9
  %s12 = scalar_select 0, %s11, %s9
  // Predicated region
  $region2: #{net_forward.1} parent=0 // pred_check
    _
  $region3: #{net_forward.1} parent=0 // pred_check_branch
    %14 = sbr.rel (0) target = $region5
  $region4: #{net_forward.1} parent=0 // pred_region
    _
  $region5: #{net_forward.1} parent=0 // pred_fallthru
    _
  // Predicated region
  $region6: #{net_forward.1} parent=0 // pred_check
    _
  $region7: #{net_forward.1} parent=0 // pred_check_branch
    %16 = sbr.rel (0) target = $region9
  $region8: #{net_forward.1} parent=0 // pred_region
    _
  $region9: #{net_forward.1} parent=0 // pred_fallthru
    _
  // Predicated region
  $region10: #{net_forward.1} parent=0 // pred_check
    _
  $region11: #{net_forward.1} parent=0 // pred_check_branch
    %18 = sbr.rel (0) target = $region13
  $region12: #{net_forward.1} parent=0 // pred_region
    _
  $region13: #{net_forward.1} parent=0 // pred_fallthru
    _
  // Predicated region
  $region14: #{net_forward.1} parent=0 // pred_check
    _
  $region15: #{net_forward.1} parent=0 // pred_check_branch
    %20 = sbr.rel (0) target = $region17
  $region16: #{net_forward.1} parent=0 // pred_region
    _
  $region17: #{net_forward.1} parent=0 // pred_fallthru
    _
  // Predicated region
  $region18: #{net_forward.1} parent=0 // pred_check
    _
  $region19: #{net_forward.1} parent=0 // pred_check_branch
    %22 = sbr.rel (0) target = $region21
  $region20: #{net_forward.1} parent=0 // pred_region
    _
  $region21: #{net_forward.1} parent=0 // pred_fallthru
    _
  // Predicated region
  $region22: #{net_forward.1} parent=0 // pred_check
    _
  $region23: #{net_forward.1} parent=0 // pred_check_branch
    %24 = sbr.rel (0) target = $region25
  $region24: #{net_forward.1} parent=0 // pred_region
    _
  $region25: #{net_forward.1} parent=0 // pred_fallthru
    _
  // Predicated region
  $region26: #{net_forward.1} parent=0 // pred_check
    _
  $region27: #{net_forward.1} parent=0 // pred_check_branch
    %26 = sbr.rel (0) target = $region29
  $region28: #{net_forward.1} parent=0 // pred_region
    _
  $region29: #{net_forward.1} parent=0 // pred_fallthru
    _
  // Predicated region
  $region30: #{net_forward.1} parent=0 // pred_check
    _
  $region31: #{net_forward.1} parent=0 // pred_check_branch
    %28 = sbr.rel (0) target = $region33
  $region32: #{net_forward.1} parent=0 // pred_region
    _
  $region33: #{net_forward.1} parent=0 // pred_fallthru
    _
  %v30 = vld [vmem:[%s0] sm:$0xf]
  %v31 = vld [vmem:[%s0 + $0x4] sm:$0xf]
  %v32 = vld [vmem:[%s0 + $0x8] sm:$0xf]
  %v33 = vld [vmem:[%s0 + $0xc] sm:$0xf]
  %v34 = vld [vmem:[%s0 + $0x10] sm:$0xf]
  %v35 = vld [vmem:[%s0 + $0x14] sm:$0xf]
  %v36 = vld [vmem:[%s0 + $0x18] sm:$0xf]
  %v37 = vld [vmem:[%s0 + $0x1c] sm:$0xf]
  %v38 = vld [vmem:[%s0 + $0x20] sm:$0xf]
  %v39 = vld [vmem:[%s0 + $0x24] sm:$0xf]
  %v40 = vld [vmem:[%s0 + $0x28] sm:$0xf]
  %v41 = vld [vmem:[%s0 + $0x2c] sm:$0xf]
  %v42 = vld [vmem:[%s0 + $0x30] sm:$0xf]
  %v43 = vld [vmem:[%s0 + $0x34] sm:$0xf]
  %v44 = vld [vmem:[%s0 + $0x38] sm:$0xf]
  %v45 = vld [vmem:[%s0 + $0x3c] sm:$0xf]
  %v46 = vld [vmem:[%s1] sm:$0xf]
  %v47 = vld [vmem:[%s1 + $0x4] sm:$0xf]
  %v48 = vld [vmem:[%s1 + $0x8] sm:$0xf]
  %v49 = vld [vmem:[%s1 + $0xc] sm:$0xf]
  %v50 = vld [vmem:[%s1 + $0x10] sm:$0xf]
  %v51 = vld [vmem:[%s1 + $0x14] sm:$0xf]
  %v52 = vld [vmem:[%s1 + $0x18] sm:$0xf]
  %v53 = vld [vmem:[%s1 + $0x1c] sm:$0xf]
  %v54 = vld [vmem:[%s1 + $0x20] sm:$0xf]
  %v55 = vld [vmem:[%s1 + $0x24] sm:$0xf]
  %v56 = vld [vmem:[%s1 + $0x28] sm:$0xf]
  %v57 = vld [vmem:[%s1 + $0x2c] sm:$0xf]
  %v58 = vld [vmem:[%s1 + $0x30] sm:$0xf]
  %v59 = vld [vmem:[%s1 + $0x34] sm:$0xf]
  %v60 = vld [vmem:[%s1 + $0x38] sm:$0xf]
  %v61 = vld [vmem:[%s1 + $0x3c] sm:$0xf]
  %v62 = vld [vmem:[%s2] sm:$0xf]
  %v63 = vld [vmem:[%s2 + $0x4] sm:$0xf]
  %v64 = vld [vmem:[%s2 + $0x8] sm:$0xf]
  %v65 = vld [vmem:[%s2 + $0xc] sm:$0xf]
  %v66 = vld [vmem:[%s2 + $0x10] sm:$0xf]
  %v67 = vld [vmem:[%s2 + $0x14] sm:$0xf]
  %v68 = vld [vmem:[%s2 + $0x18] sm:$0xf]
  %v69 = vld [vmem:[%s2 + $0x1c] sm:$0xf]
  %v70 = vld [vmem:[%s2 + $0x20] sm:$0xf]
  %v71 = vld [vmem:[%s2 + $0x24] sm:$0xf]
  %v72 = vld [vmem:[%s2 + $0x28] sm:$0xf]
  %v73 = vld [vmem:[%s2 + $0x2c] sm:$0xf]
  %v74 = vld [vmem:[%s2 + $0x30] sm:$0xf]
  %v75 = vld [vmem:[%s2 + $0x34] sm:$0xf]
  %v76 = vld [vmem:[%s2 + $0x38] sm:$0xf]
  %v77 = vld [vmem:[%s2 + $0x3c] sm:$0xf]
  %v94 = vunpack.c.l.b16 %v46
  %v95 = vunpack.c.l.b16 %v47
  %v96 = vunpack.c.l.b16 %v48
  %v97 = vunpack.c.l.b16 %v49
  %v98 = vunpack.c.l.b16 %v50
  %v99 = vunpack.c.l.b16 %v51
  %v100 = vunpack.c.l.b16 %v52
  %v101 = vunpack.c.l.b16 %v53
  %v102 = vunpack.c.l.b16 %v54
  %v103 = vunpack.c.l.b16 %v55
  %v104 = vunpack.c.l.b16 %v56
  %v105 = vunpack.c.l.b16 %v57
  %v106 = vunpack.c.l.b16 %v58
  %v107 = vunpack.c.l.b16 %v59
  %v108 = vunpack.c.l.b16 %v60
  %v109 = vunpack.c.l.b16 %v61
  %v110 = vpack.c.b16 %v95, %v94
  %v111 = vpack.c.b16 %v97, %v96
  %v112 = vpack.c.b16 %v99, %v98
  %v113 = vpack.c.b16 %v101, %v100
  %v114 = vpack.c.b16 %v103, %v102
  %v115 = vpack.c.b16 %v105, %v104
  %v116 = vpack.c.b16 %v107, %v106
  %v117 = vpack.c.b16 %v109, %v108
  %v142 = vunpack.c.l.b16 %v62
  %v143 = vunpack.c.l.b16 %v63
  %v144 = vunpack.c.l.b16 %v64
  %v145 = vunpack.c.l.b16 %v65
  %v146 = vunpack.c.l.b16 %v66
  %v147 = vunpack.c.l.b16 %v67
  %v148 = vunpack.c.l.b16 %v68
  %v149 = vunpack.c.l.b16 %v69
  %v150 = vunpack.c.l.b16 %v70
  %v151 = vunpack.c.l.b16 %v71
  %v152 = vunpack.c.l.b16 %v72
  %v153 = vunpack.c.l.b16 %v73
  %v154 = vunpack.c.l.b16 %v74
  %v155 = vunpack.c.l.b16 %v75
  %v156 = vunpack.c.l.b16 %v76
  %v157 = vunpack.c.l.b16 %v77
  %v158 = vpack.c.b16 %v143, %v142
  %v159 = vpack.c.b16 %v145, %v144
  %v160 = vpack.c.b16 %v147, %v146
  %v161 = vpack.c.b16 %v149, %v148
  %v162 = vpack.c.b16 %v151, %v150
  %v163 = vpack.c.b16 %v153, %v152
  %v164 = vpack.c.b16 %v155, %v154
  %v165 = vpack.c.b16 %v157, %v156
  %174 = vmatprep.subr.bf16.mxu0 0
  %175 = vmatpush1.bf16.msra.mxu0 %v158
  %176 = vmatprep.subr.bf16.mxu0 0
  %177 = vmatpush1.bf16.msra.mxu0 %v159
  %178 = vmatprep.subr.bf16.mxu0 0
  %179 = vmatpush1.bf16.msra.mxu0 %v160
  %180 = vmatprep.subr.bf16.mxu0 0
  %181 = vmatpush1.bf16.msra.mxu0 %v161
  %182 = vmatprep.subr.bf16.mxu0 0
  %183 = vmatpush1.bf16.msra.mxu0 %v162
  %184 = vmatprep.subr.bf16.mxu0 0
  %185 = vmatpush1.bf16.msra.mxu0 %v163
  %186 = vmatprep.subr.bf16.mxu0 0
  %187 = vmatpush1.bf16.msra.mxu0 %v164
  %188 = vmatprep.subr.bf16.mxu0 0
  %189 = vmatpush1.bf16.msra.mxu0 %v165
  %190 = vmatprep.subr.bf16.mxu0 0
  %191 = vmatpush1.bf16.msra.mxu0 0
  %192 = vmatprep.subr.bf16.mxu0 0
  %193 = vmatpush1.bf16.msra.mxu0 0
  %194 = vmatprep.subr.bf16.mxu0 0
  %195 = vmatpush1.bf16.msra.mxu0 0
  %196 = vmatprep.subr.bf16.mxu0 0
  %197 = vmatpush1.bf16.msra.mxu0 0
  %198 = vmatprep.subr.bf16.mxu0 0
  %199 = vmatpush1.bf16.msra.mxu0 0
  %200 = vmatprep.subr.bf16.mxu0 0
  %201 = vmatpush1.bf16.msra.mxu0 0
  %202 = vmatprep.subr.bf16.mxu0 0
  %203 = vmatpush1.bf16.msra.mxu0 0
  %204 = vmatprep.subr.bf16.mxu0 0
  %205 = vmatpush1.bf16.msra.mxu0 0
  %206 = vmatprep.mubr.bf16.mxu0 0
  %207 = vmatmul.mubr.bf16.gmra.mrb[0].mxu0 %v110
  %v208 = vpop.f32.mrb[0].mxu0
  %v209 = vadd.f32 0.0, %v208
  %v210 = vpop.f32.mrb[0].mxu0
  %v211 = vpop.f32.mrb[0].mxu0
  %v212 = vadd.f32 0.0, %v211
  %v213 = vpop.f32.mrb[0].mxu0
  %214 = vmatprep.mubr.bf16.mxu0 0
  %215 = vmatmul.mubr.bf16.gmra.mrb[0].mxu0 %v111
  %v216 = vpop.f32.mrb[0].mxu0
  %v217 = vadd.f32 0.0, %v216
  %v218 = vpop.f32.mrb[0].mxu0
  %v219 = vpop.f32.mrb[0].mxu0
  %v220 = vadd.f32 0.0, %v219
  %v221 = vpop.f32.mrb[0].mxu0
  %222 = vmatprep.mubr.bf16.mxu0 0
  %223 = vmatmul.mubr.bf16.gmra.mrb[0].mxu0 %v112
  %v224 = vpop.f32.mrb[0].mxu0
  %v225 = vadd.f32 0.0, %v224
  %v226 = vpop.f32.mrb[0].mxu0
  %v227 = vpop.f32.mrb[0].mxu0
  %v228 = vadd.f32 0.0, %v227
  %v229 = vpop.f32.mrb[0].mxu0
  %230 = vmatprep.mubr.bf16.mxu0 0
  %231 = vmatmul.mubr.bf16.gmra.mrb[0].mxu0 %v113
  %v232 = vpop.f32.mrb[0].mxu0
  %v233 = vadd.f32 0.0, %v232
  %v234 = vpop.f32.mrb[0].mxu0
  %v235 = vpop.f32.mrb[0].mxu0
  %v236 = vadd.f32 0.0, %v235
  %v237 = vpop.f32.mrb[0].mxu0
  %238 = vmatprep.mubr.bf16.mxu0 0
  %239 = vmatmul.mubr.bf16.gmra.mrb[0].mxu0 %v114
  %v240 = vpop.f32.mrb[0].mxu0
  %v241 = vadd.f32 0.0, %v240
  %v242 = vpop.f32.mrb[0].mxu0
  %v243 = vpop.f32.mrb[0].mxu0
  %v244 = vadd.f32 0.0, %v243
  %v245 = vpop.f32.mrb[0].mxu0
  %246 = vmatprep.mubr.bf16.mxu0 0
  %247 = vmatmul.mubr.bf16.gmra.mrb[0].mxu0 %v115
  %v248 = vpop.f32.mrb[0].mxu0
  %v249 = vadd.f32 0.0, %v248
  %v250 = vpop.f32.mrb[0].mxu0
  %v251 = vpop.f32.mrb[0].mxu0
  %v252 = vadd.f32 0.0, %v251
  %v253 = vpop.f32.mrb[0].mxu0
  %254 = vmatprep.mubr.bf16.mxu0 0
  %255 = vmatmul.mubr.bf16.gmra.mrb[0].mxu0 %v116
  %v256 = vpop.f32.mrb[0].mxu0
  %v257 = vadd.f32 0.0, %v256
  %v258 = vpop.f32.mrb[0].mxu0
  %v259 = vpop.f32.mrb[0].mxu0
  %v260 = vadd.f32 0.0, %v259
  %v261 = vpop.f32.mrb[0].mxu0
  %262 = vmatprep.mubr.bf16.mxu0 0
  %263 = vmatmul.mubr.bf16.gmra.mrb[0].mxu0 %v117
  %v264 = vpop.f32.mrb[0].mxu0
  %v265 = vadd.f32 0.0, %v264
  %v266 = vpop.f32.mrb[0].mxu0
  %v267 = vpop.f32.mrb[0].mxu0
  %v268 = vadd.f32 0.0, %v267
  %v269 = vpop.f32.mrb[0].mxu0
  %270 = vdwg.mxu0
  %v271 = vpack.c.bf16 %v212, %v209
  %v272 = vpack.c.bf16 %v220, %v217
  %v273 = vpack.c.bf16 %v228, %v225
  %v274 = vpack.c.bf16 %v236, %v233
  %v275 = vpack.c.bf16 %v244, %v241
  %v276 = vpack.c.bf16 %v252, %v249
  %v277 = vpack.c.bf16 %v260, %v257
  %v278 = vpack.c.bf16 %v268, %v265
  %v279 = vld [vmem:[%s3] sm:$0x1]
  %v281 = vlaneseq
  %v282 = vshrl.u32 %v281, 7
  %v283 = vsub.s32 0, %v282
  %v284 = vrot.slane %v279, %v283
  %v302 = vunpack.c.l.b16 %v30
  %v303 = vunpack.c.l.b16 %v31
  %v304 = vunpack.c.l.b16 %v32
  %v305 = vunpack.c.l.b16 %v33
  %v306 = vunpack.c.l.b16 %v34
  %v307 = vunpack.c.l.b16 %v35
  %v308 = vunpack.c.l.b16 %v36
  %v309 = vunpack.c.l.b16 %v37
  %v310 = vunpack.c.l.b16 %v38
  %v311 = vunpack.c.l.b16 %v39
  %v312 = vunpack.c.l.b16 %v40
  %v313 = vunpack.c.l.b16 %v41
  %v314 = vunpack.c.l.b16 %v42
  %v315 = vunpack.c.l.b16 %v43
  %v316 = vunpack.c.l.b16 %v44
  %v317 = vunpack.c.l.b16 %v45
  %v318 = vpack.c.b16 %v303, %v302
  %v319 = vpack.c.b16 %v305, %v304
  %v320 = vpack.c.b16 %v307, %v306
  %v321 = vpack.c.b16 %v309, %v308
  %v322 = vpack.c.b16 %v311, %v310
  %v323 = vpack.c.b16 %v313, %v312
  %v324 = vpack.c.b16 %v315, %v314
  %v325 = vpack.c.b16 %v317, %v316
  %334 = vmatprep.subr.bf16.mxu0 0
  %335 = vmatpush1.bf16.msra.mxu0 %v271
  %336 = vmatprep.subr.bf16.mxu0 0
  %337 = vmatpush1.bf16.msra.mxu0 %v272
  %338 = vmatprep.subr.bf16.mxu0 0
  %339 = vmatpush1.bf16.msra.mxu0 %v273
  %340 = vmatprep.subr.bf16.mxu0 0
  %341 = vmatpush1.bf16.msra.mxu0 %v274
  %342 = vmatprep.subr.bf16.mxu0 0
  %343 = vmatpush1.bf16.msra.mxu0 %v275
  %344 = vmatprep.subr.bf16.mxu0 0
  %345 = vmatpush1.bf16.msra.mxu0 %v276
  %346 = vmatprep.subr.bf16.mxu0 0
  %347 = vmatpush1.bf16.msra.mxu0 %v277
  %348 = vmatprep.subr.bf16.mxu0 0
  %349 = vmatpush1.bf16.msra.mxu0 %v278
  %350 = vmatprep.subr.bf16.mxu0 0
  %351 = vmatpush1.bf16.msra.mxu0 0
  %352 = vmatprep.subr.bf16.mxu0 0
  %353 = vmatpush1.bf16.msra.mxu0 0
  %354 = vmatprep.subr.bf16.mxu0 0
  %355 = vmatpush1.bf16.msra.mxu0 0
  %356 = vmatprep.subr.bf16.mxu0 0
  %357 = vmatpush1.bf16.msra.mxu0 0
  %358 = vmatprep.subr.bf16.mxu0 0
  %359 = vmatpush1.bf16.msra.mxu0 0
  %360 = vmatprep.subr.bf16.mxu0 0
  %361 = vmatpush1.bf16.msra.mxu0 0
  %362 = vmatprep.subr.bf16.mxu0 0
  %363 = vmatpush1.bf16.msra.mxu0 0
  %364 = vmatprep.subr.bf16.mxu0 0
  %365 = vmatpush1.bf16.msra.mxu0 0
  %366 = vmatprep.mubr.bf16.mxu0 0
  %367 = vmatmul.mubr.bf16.gmra.mrb[0].mxu0 %v318
  %v368 = vpop.f32.mrb[0].mxu0
  %v369 = vadd.f32 %v284, %v368
  %v370 = vpop.f32.mrb[0].mxu0
  %v371 = vpop.f32.mrb[0].mxu0
  %v372 = vadd.f32 %v284, %v371
  %v373 = vpop.f32.mrb[0].mxu0
  %374 = vmatprep.mubr.bf16.mxu0 0
  %375 = vmatmul.mubr.bf16.gmra.mrb[0].mxu0 %v319
  %v376 = vpop.f32.mrb[0].mxu0
  %v377 = vadd.f32 %v284, %v376
  %v378 = vpop.f32.mrb[0].mxu0
  %v379 = vpop.f32.mrb[0].mxu0
  %v380 = vadd.f32 %v284, %v379
  %v381 = vpop.f32.mrb[0].mxu0
  %382 = vmatprep.mubr.bf16.mxu0 0
  %383 = vmatmul.mubr.bf16.gmra.mrb[0].mxu0 %v320
  %v384 = vpop.f32.mrb[0].mxu0
  %v385 = vadd.f32 %v284, %v384
  %v386 = vpop.f32.mrb[0].mxu0
  %v387 = vpop.f32.mrb[0].mxu0
  %v388 = vadd.f32 %v284, %v387
  %v389 = vpop.f32.mrb[0].mxu0
  %390 = vmatprep.mubr.bf16.mxu0 0
  %391 = vmatmul.mubr.bf16.gmra.mrb[0].mxu0 %v321
  %v392 = vpop.f32.mrb[0].mxu0
  %v393 = vadd.f32 %v284, %v392
  %v394 = vpop.f32.mrb[0].mxu0
  %v395 = vpop.f32.mrb[0].mxu0
  %v396 = vadd.f32 %v284, %v395
  %v397 = vpop.f32.mrb[0].mxu0
  %398 = vmatprep.mubr.bf16.mxu0 0
  %399 = vmatmul.mubr.bf16.gmra.mrb[0].mxu0 %v322
  %v400 = vpop.f32.mrb[0].mxu0
  %v401 = vadd.f32 %v284, %v400
  %v402 = vpop.f32.mrb[0].mxu0
  %v403 = vpop.f32.mrb[0].mxu0
  %v404 = vadd.f32 %v284, %v403
  %v405 = vpop.f32.mrb[0].mxu0
  %406 = vmatprep.mubr.bf16.mxu0 0
  %407 = vmatmul.mubr.bf16.gmra.mrb[0].mxu0 %v323
  %v408 = vpop.f32.mrb[0].mxu0
  %v409 = vadd.f32 %v284, %v408
  %v410 = vpop.f32.mrb[0].mxu0
  %v411 = vpop.f32.mrb[0].mxu0
  %v412 = vadd.f32 %v284, %v411
  %v413 = vpop.f32.mrb[0].mxu0
  %414 = vmatprep.mubr.bf16.mxu0 0
  %415 = vmatmul.mubr.bf16.gmra.mrb[0].mxu0 %v324
  %v416 = vpop.f32.mrb[0].mxu0
  %v417 = vadd.f32 %v284, %v416
  %v418 = vpop.f32.mrb[0].mxu0
  %v419 = vpop.f32.mrb[0].mxu0
  %v420 = vadd.f32 %v284, %v419
  %v421 = vpop.f32.mrb[0].mxu0
  %422 = vmatprep.mubr.bf16.mxu0 0
  %423 = vmatmul.mubr.bf16.gmra.mrb[0].mxu0 %v325
  %v424 = vpop.f32.mrb[0].mxu0
  %v425 = vadd.f32 %v284, %v424
  %v426 = vpop.f32.mrb[0].mxu0
  %v427 = vpop.f32.mrb[0].mxu0
  %v428 = vadd.f32 %v284, %v427
  %v429 = vpop.f32.mrb[0].mxu0
  %430 = vdwg.mxu0
  %v431 = vmax.f32 %v369, 0.0
  %v432 = vmax.f32 %v372, 0.0
  %v433 = vmax.f32 %v377, 0.0
  %v434 = vmax.f32 %v380, 0.0
  %v435 = vmax.f32 %v385, 0.0
  %v436 = vmax.f32 %v388, 0.0
  %v437 = vmax.f32 %v393, 0.0
  %v438 = vmax.f32 %v396, 0.0
  %v439 = vmax.f32 %v401, 0.0
  %v440 = vmax.f32 %v404, 0.0
  %v441 = vmax.f32 %v409, 0.0
  %v442 = vmax.f32 %v412, 0.0
  %v443 = vmax.f32 %v417, 0.0
  %v444 = vmax.f32 %v420, 0.0
  %v445 = vmax.f32 %v425, 0.0
  %v446 = vmax.f32 %v428, 0.0
  %v447 = vpack.c.bf16 %v432, %v431
  %v448 = vpack.c.bf16 %v434, %v433
  %v449 = vpack.c.bf16 %v436, %v435
  %v450 = vpack.c.bf16 %v438, %v437
  %v451 = vpack.c.bf16 %v440, %v439
  %v452 = vpack.c.bf16 %v442, %v441
  %v453 = vpack.c.bf16 %v444, %v443
  %v454 = vpack.c.bf16 %v446, %v445
  %v455 = vld [vmem:[%s4] sm:$0xf]
  %v456 = vld [vmem:[%s4 + $0x4] sm:$0xf]
  %v457 = vld [vmem:[%s4 + $0x8] sm:$0xf]
  %v458 = vld [vmem:[%s4 + $0xc] sm:$0xf]
  %v459 = vld [vmem:[%s4 + $0x10] sm:$0xf]
  %v460 = vld [vmem:[%s4 + $0x14] sm:$0xf]
  %v461 = vld [vmem:[%s4 + $0x18] sm:$0xf]
  %v462 = vld [vmem:[%s4 + $0x1c] sm:$0xf]
  %v463 = vld [vmem:[%s4 + $0x20] sm:$0xf]
  %v464 = vld [vmem:[%s4 + $0x24] sm:$0xf]
  %v465 = vld [vmem:[%s4 + $0x28] sm:$0xf]
  %v466 = vld [vmem:[%s4 + $0x2c] sm:$0xf]
  %v467 = vld [vmem:[%s4 + $0x30] sm:$0xf]
  %v468 = vld [vmem:[%s4 + $0x34] sm:$0xf]
  %v469 = vld [vmem:[%s4 + $0x38] sm:$0xf]
  %v470 = vld [vmem:[%s4 + $0x3c] sm:$0xf]
  %v487 = vunpack.c.l.b16 %v455
  %v488 = vunpack.c.l.b16 %v456
  %v489 = vunpack.c.l.b16 %v457
  %v490 = vunpack.c.l.b16 %v458
  %v491 = vunpack.c.l.b16 %v459
  %v492 = vunpack.c.l.b16 %v460
  %v493 = vunpack.c.l.b16 %v461
  %v494 = vunpack.c.l.b16 %v462
  %v495 = vunpack.c.l.b16 %v463
  %v496 = vunpack.c.l.b16 %v464
  %v497 = vunpack.c.l.b16 %v465
  %v498 = vunpack.c.l.b16 %v466
  %v499 = vunpack.c.l.b16 %v467
  %v500 = vunpack.c.l.b16 %v468
  %v501 = vunpack.c.l.b16 %v469
  %v502 = vunpack.c.l.b16 %v470
  %v503 = vpack.c.b16 %v488, %v487
  %v504 = vpack.c.b16 %v490, %v489
  %v505 = vpack.c.b16 %v492, %v491
  %v506 = vpack.c.b16 %v494, %v493
  %v507 = vpack.c.b16 %v496, %v495
  %v508 = vpack.c.b16 %v498, %v497
  %v509 = vpack.c.b16 %v500, %v499
  %v510 = vpack.c.b16 %v502, %v501
  %519 = vmatprep.subr.bf16.mxu0 0
  %520 = vmatpush1.bf16.msra.mxu0 %v503
  %521 = vmatprep.subr.bf16.mxu0 0
  %522 = vmatpush1.bf16.msra.mxu0 %v504
  %523 = vmatprep.subr.bf16.mxu0 0
  %524 = vmatpush1.bf16.msra.mxu0 %v505
  %525 = vmatprep.subr.bf16.mxu0 0
  %526 = vmatpush1.bf16.msra.mxu0 %v506
  %527 = vmatprep.subr.bf16.mxu0 0
  %528 = vmatpush1.bf16.msra.mxu0 %v507
  %529 = vmatprep.subr.bf16.mxu0 0
  %530 = vmatpush1.bf16.msra.mxu0 %v508
  %531 = vmatprep.subr.bf16.mxu0 0
  %532 = vmatpush1.bf16.msra.mxu0 %v509
  %533 = vmatprep.subr.bf16.mxu0 0
  %534 = vmatpush1.bf16.msra.mxu0 %v510
  %535 = vmatprep.subr.bf16.mxu0 0
  %536 = vmatpush1.bf16.msra.mxu0 0
  %537 = vmatprep.subr.bf16.mxu0 0
  %538 = vmatpush1.bf16.msra.mxu0 0
  %539 = vmatprep.subr.bf16.mxu0 0
  %540 = vmatpush1.bf16.msra.mxu0 0
  %541 = vmatprep.subr.bf16.mxu0 0
  %542 = vmatpush1.bf16.msra.mxu0 0
  %543 = vmatprep.subr.bf16.mxu0 0
  %544 = vmatpush1.bf16.msra.mxu0 0
  %545 = vmatprep.subr.bf16.mxu0 0
  %546 = vmatpush1.bf16.msra.mxu0 0
  %547 = vmatprep.subr.bf16.mxu0 0
  %548 = vmatpush1.bf16.msra.mxu0 0
  %549 = vmatprep.subr.bf16.mxu0 0
  %550 = vmatpush1.bf16.msra.mxu0 0
  %551 = vmatprep.mubr.bf16.mxu0 0
  %552 = vmatmul.mubr.bf16.gmra.mrb[0].mxu0 %v447
  %v553 = vpop.f32.mrb[0].mxu0
  %v554 = vadd.f32 0.0, %v553
  %v555 = vpop.f32.mrb[0].mxu0
  %v556 = vpop.f32.mrb[0].mxu0
  %v557 = vadd.f32 0.0, %v556
  %v558 = vpop.f32.mrb[0].mxu0
  %559 = vmatprep.mubr.bf16.mxu0 0
  %560 = vmatmul.mubr.bf16.gmra.mrb[0].mxu0 %v448
  %v561 = vpop.f32.mrb[0].mxu0
  %v562 = vadd.f32 0.0, %v561
  %v563 = vpop.f32.mrb[0].mxu0
  %v564 = vpop.f32.mrb[0].mxu0
  %v565 = vadd.f32 0.0, %v564
  %v566 = vpop.f32.mrb[0].mxu0
  %567 = vmatprep.mubr.bf16.mxu0 0
  %568 = vmatmul.mubr.bf16.gmra.mrb[0].mxu0 %v449
  %v569 = vpop.f32.mrb[0].mxu0
  %v570 = vadd.f32 0.0, %v569
  %v571 = vpop.f32.mrb[0].mxu0
  %v572 = vpop.f32.mrb[0].mxu0
  %v573 = vadd.f32 0.0, %v572
  %v574 = vpop.f32.mrb[0].mxu0
  %575 = vmatprep.mubr.bf16.mxu0 0
  %576 = vmatmul.mubr.bf16.gmra.mrb[0].mxu0 %v450
  %v577 = vpop.f32.mrb[0].mxu0
  %v578 = vadd.f32 0.0, %v577
  %v579 = vpop.f32.mrb[0].mxu0
  %v580 = vpop.f32.mrb[0].mxu0
  %v581 = vadd.f32 0.0, %v580
  %v582 = vpop.f32.mrb[0].mxu0
  %583 = vmatprep.mubr.bf16.mxu0 0
  %584 = vmatmul.mubr.bf16.gmra.mrb[0].mxu0 %v451
  %v585 = vpop.f32.mrb[0].mxu0
  %v586 = vadd.f32 0.0, %v585
  %v587 = vpop.f32.mrb[0].mxu0
  %v588 = vpop.f32.mrb[0].mxu0
  %v589 = vadd.f32 0.0, %v588
  %v590 = vpop.f32.mrb[0].mxu0
  %591 = vmatprep.mubr.bf16.mxu0 0
  %592 = vmatmul.mubr.bf16.gmra.mrb[0].mxu0 %v452
  %v593 = vpop.f32.mrb[0].mxu0
  %v594 = vadd.f32 0.0, %v593
  %v595 = vpop.f32.mrb[0].mxu0
  %v596 = vpop.f32.mrb[0].mxu0
  %v597 = vadd.f32 0.0, %v596
  %v598 = vpop.f32.mrb[0].mxu0
  %599 = vmatprep.mubr.bf16.mxu0 0
  %600 = vmatmul.mubr.bf16.gmra.mrb[0].mxu0 %v453
  %v601 = vpop.f32.mrb[0].mxu0
  %v602 = vadd.f32 0.0, %v601
  %v603 = vpop.f32.mrb[0].mxu0
  %v604 = vpop.f32.mrb[0].mxu0
  %v605 = vadd.f32 0.0, %v604
  %v606 = vpop.f32.mrb[0].mxu0
  %607 = vmatprep.mubr.bf16.mxu0 0
  %608 = vmatmul.mubr.bf16.gmra.mrb[0].mxu0 %v454
  %v609 = vpop.f32.mrb[0].mxu0
  %v610 = vadd.f32 0.0, %v609
  %v611 = vpop.f32.mrb[0].mxu0
  %v612 = vpop.f32.mrb[0].mxu0
  %v613 = vadd.f32 0.0, %v612
  %v614 = vpop.f32.mrb[0].mxu0
  %615 = vdwg.mxu0
  %v616 = vpack.c.bf16 %v557, %v554
  %v617 = vpack.c.bf16 %v565, %v562
  %v618 = vpack.c.bf16 %v573, %v570
  %v619 = vpack.c.bf16 %v581, %v578
  %v620 = vpack.c.bf16 %v589, %v586
  %v621 = vpack.c.bf16 %v597, %v594
  %v622 = vpack.c.bf16 %v605, %v602
  %v623 = vpack.c.bf16 %v613, %v610
  %v624 = vld [vmem:[%s5] sm:$0x1]
  %v626 = vlaneseq
  %v627 = vshrl.u32 %v626, 7
  %v628 = vsub.s32 0, %v627
  %v629 = vrot.slane %v624, %v628
  %631 = vmatprep.subr.bf16.mxu0 0
  %632 = vmatpush1.bf16.msra.mxu0 %v616
  %633 = vmatprep.subr.bf16.mxu0 0
  %634 = vmatpush1.bf16.msra.mxu0 %v617
  %635 = vmatprep.subr.bf16.mxu0 0
  %636 = vmatpush1.bf16.msra.mxu0 %v618
  %637 = vmatprep.subr.bf16.mxu0 0
  %638 = vmatpush1.bf16.msra.mxu0 %v619
  %639 = vmatprep.subr.bf16.mxu0 0
  %640 = vmatpush1.bf16.msra.mxu0 %v620
  %641 = vmatprep.subr.bf16.mxu0 0
  %642 = vmatpush1.bf16.msra.mxu0 %v621
  %643 = vmatprep.subr.bf16.mxu0 0
  %644 = vmatpush1.bf16.msra.mxu0 %v622
  %645 = vmatprep.subr.bf16.mxu0 0
  %646 = vmatpush1.bf16.msra.mxu0 %v623
  %647 = vmatprep.subr.bf16.mxu0 0
  %648 = vmatpush1.bf16.msra.mxu0 0
  %649 = vmatprep.subr.bf16.mxu0 0
  %650 = vmatpush1.bf16.msra.mxu0 0
  %651 = vmatprep.subr.bf16.mxu0 0
  %652 = vmatpush1.bf16.msra.mxu0 0
  %653 = vmatprep.subr.bf16.mxu0 0
  %654 = vmatpush1.bf16.msra.mxu0 0
  %655 = vmatprep.subr.bf16.mxu0 0
  %656 = vmatpush1.bf16.msra.mxu0 0
  %657 = vmatprep.subr.bf16.mxu0 0
  %658 = vmatpush1.bf16.msra.mxu0 0
  %659 = vmatprep.subr.bf16.mxu0 0
  %660 = vmatpush1.bf16.msra.mxu0 0
  %661 = vmatprep.subr.bf16.mxu0 0
  %662 = vmatpush1.bf16.msra.mxu0 0
  %663 = vmatprep.mubr.bf16.mxu0 0
  %664 = vmatmul.mubr.bf16.gmra.mrb[0].mxu0 %v318
  %v665 = vpop.f32.mrb[0].mxu0
  %v666 = vadd.f32 %v629, %v665
  %v667 = vpop.f32.mrb[0].mxu0
  %v668 = vpop.f32.mrb[0].mxu0
  %v669 = vadd.f32 %v629, %v668
  %v670 = vpop.f32.mrb[0].mxu0
  %671 = vmatprep.mubr.bf16.mxu0 0
  %672 = vmatmul.mubr.bf16.gmra.mrb[0].mxu0 %v319
  %v673 = vpop.f32.mrb[0].mxu0
  %v674 = vadd.f32 %v629, %v673
  %v675 = vpop.f32.mrb[0].mxu0
  %v676 = vpop.f32.mrb[0].mxu0
  %v677 = vadd.f32 %v629, %v676
  %v678 = vpop.f32.mrb[0].mxu0
  %679 = vmatprep.mubr.bf16.mxu0 0
  %680 = vmatmul.mubr.bf16.gmra.mrb[0].mxu0 %v320
  %v681 = vpop.f32.mrb[0].mxu0
  %v682 = vadd.f32 %v629, %v681
  %v683 = vpop.f32.mrb[0].mxu0
  %v684 = vpop.f32.mrb[0].mxu0
  %v685 = vadd.f32 %v629, %v684
  %v686 = vpop.f32.mrb[0].mxu0
  %687 = vmatprep.mubr.bf16.mxu0 0
  %688 = vmatmul.mubr.bf16.gmra.mrb[0].mxu0 %v321
  %v689 = vpop.f32.mrb[0].mxu0
  %v690 = vadd.f32 %v629, %v689
  %v691 = vpop.f32.mrb[0].mxu0
  %v692 = vpop.f32.mrb[0].mxu0
  %v693 = vadd.f32 %v629, %v692
  %v694 = vpop.f32.mrb[0].mxu0
  %695 = vmatprep.mubr.bf16.mxu0 0
  %696 = vmatmul.mubr.bf16.gmra.mrb[0].mxu0 %v322
  %v697 = vpop.f32.mrb[0].mxu0
  %v698 = vadd.f32 %v629, %v697
  %v699 = vpop.f32.mrb[0].mxu0
  %v700 = vpop.f32.mrb[0].mxu0
  %v701 = vadd.f32 %v629, %v700
  %v702 = vpop.f32.mrb[0].mxu0
  %703 = vmatprep.mubr.bf16.mxu0 0
  %704 = vmatmul.mubr.bf16.gmra.mrb[0].mxu0 %v323
  %v705 = vpop.f32.mrb[0].mxu0
  %v706 = vadd.f32 %v629, %v705
  %v707 = vpop.f32.mrb[0].mxu0
  %v708 = vpop.f32.mrb[0].mxu0
  %v709 = vadd.f32 %v629, %v708
  %v710 = vpop.f32.mrb[0].mxu0
  %711 = vmatprep.mubr.bf16.mxu0 0
  %712 = vmatmul.mubr.bf16.gmra.mrb[0].mxu0 %v324
  %v713 = vpop.f32.mrb[0].mxu0
  %v714 = vadd.f32 %v629, %v713
  %v715 = vpop.f32.mrb[0].mxu0
  %v716 = vpop.f32.mrb[0].mxu0
  %v717 = vadd.f32 %v629, %v716
  %v718 = vpop.f32.mrb[0].mxu0
  %719 = vmatprep.mubr.bf16.mxu0 0
  %720 = vmatmul.mubr.bf16.gmra.mrb[0].mxu0 %v325
  %v721 = vpop.f32.mrb[0].mxu0
  %v722 = vadd.f32 %v629, %v721
  %v723 = vpop.f32.mrb[0].mxu0
  %v724 = vpop.f32.mrb[0].mxu0
  %v725 = vadd.f32 %v629, %v724
  %v726 = vpop.f32.mrb[0].mxu0
  %727 = vdwg.mxu0
  %v728 = vmax.f32 %v666, 0.0
  %v729 = vmax.f32 %v669, 0.0
  %v730 = vmax.f32 %v674, 0.0
  %v731 = vmax.f32 %v677, 0.0
  %v732 = vmax.f32 %v682, 0.0
  %v733 = vmax.f32 %v685, 0.0
  %v734 = vmax.f32 %v690, 0.0
  %v735 = vmax.f32 %v693, 0.0
  %v736 = vmax.f32 %v698, 0.0
  %v737 = vmax.f32 %v701, 0.0
  %v738 = vmax.f32 %v706, 0.0
  %v739 = vmax.f32 %v709, 0.0
  %v740 = vmax.f32 %v714, 0.0
  %v741 = vmax.f32 %v717, 0.0
  %v742 = vmax.f32 %v722, 0.0
  %v743 = vmax.f32 %v725, 0.0
  %v744 = vpack.c.bf16 %v729, %v728
  %v745 = vpack.c.bf16 %v731, %v730
  %v746 = vpack.c.bf16 %v733, %v732
  %v747 = vpack.c.bf16 %v735, %v734
  %v748 = vpack.c.bf16 %v737, %v736
  %v749 = vpack.c.bf16 %v739, %v738
  %v750 = vpack.c.bf16 %v741, %v740
  %v751 = vpack.c.bf16 %v743, %v742
  %v752 = vld [vmem:[%s6] sm:$0xf]
  %v753 = vld [vmem:[%s6 + $0x4] sm:$0xf]
  %v754 = vld [vmem:[%s6 + $0x8] sm:$0xf]
  %v755 = vld [vmem:[%s6 + $0xc] sm:$0xf]
  %v756 = vld [vmem:[%s6 + $0x10] sm:$0xf]
  %v757 = vld [vmem:[%s6 + $0x14] sm:$0xf]
  %v758 = vld [vmem:[%s6 + $0x18] sm:$0xf]
  %v759 = vld [vmem:[%s6 + $0x1c] sm:$0xf]
  %v760 = vld [vmem:[%s6 + $0x20] sm:$0xf]
  %v761 = vld [vmem:[%s6 + $0x24] sm:$0xf]
  %v762 = vld [vmem:[%s6 + $0x28] sm:$0xf]
  %v763 = vld [vmem:[%s6 + $0x2c] sm:$0xf]
  %v764 = vld [vmem:[%s6 + $0x30] sm:$0xf]
  %v765 = vld [vmem:[%s6 + $0x34] sm:$0xf]
  %v766 = vld [vmem:[%s6 + $0x38] sm:$0xf]
  %v767 = vld [vmem:[%s6 + $0x3c] sm:$0xf]
  %v768 = vld [vmem:[%s7] sm:$0x1]
  %v770 = vlaneseq
  %v771 = vshrl.u32 %v770, 7
  %v772 = vsub.s32 0, %v771
  %v773 = vrot.slane %v768, %v772
  %v791 = vunpack.c.l.b16 %v752
  %v792 = vunpack.c.l.b16 %v753
  %v793 = vunpack.c.l.b16 %v754
  %v794 = vunpack.c.l.b16 %v755
  %v795 = vunpack.c.l.b16 %v756
  %v796 = vunpack.c.l.b16 %v757
  %v797 = vunpack.c.l.b16 %v758
  %v798 = vunpack.c.l.b16 %v759
  %v799 = vunpack.c.l.b16 %v760
  %v800 = vunpack.c.l.b16 %v761
  %v801 = vunpack.c.l.b16 %v762
  %v802 = vunpack.c.l.b16 %v763
  %v803 = vunpack.c.l.b16 %v764
  %v804 = vunpack.c.l.b16 %v765
  %v805 = vunpack.c.l.b16 %v766
  %v806 = vunpack.c.l.b16 %v767
  %v807 = vpack.c.b16 %v792, %v791
  %v808 = vpack.c.b16 %v794, %v793
  %v809 = vpack.c.b16 %v796, %v795
  %v810 = vpack.c.b16 %v798, %v797
  %v811 = vpack.c.b16 %v800, %v799
  %v812 = vpack.c.b16 %v802, %v801
  %v813 = vpack.c.b16 %v804, %v803
  %v814 = vpack.c.b16 %v806, %v805
  %823 = vmatprep.subr.bf16.mxu0 0
  %824 = vmatpush1.bf16.msra.mxu0 %v807
  %825 = vmatprep.subr.bf16.mxu0 0
  %826 = vmatpush1.bf16.msra.mxu0 %v808
  %827 = vmatprep.subr.bf16.mxu0 0
  %828 = vmatpush1.bf16.msra.mxu0 %v809
  %829 = vmatprep.subr.bf16.mxu0 0
  %830 = vmatpush1.bf16.msra.mxu0 %v810
  %831 = vmatprep.subr.bf16.mxu0 0
  %832 = vmatpush1.bf16.msra.mxu0 %v811
  %833 = vmatprep.subr.bf16.mxu0 0
  %834 = vmatpush1.bf16.msra.mxu0 %v812
  %835 = vmatprep.subr.bf16.mxu0 0
  %836 = vmatpush1.bf16.msra.mxu0 %v813
  %837 = vmatprep.subr.bf16.mxu0 0
  %838 = vmatpush1.bf16.msra.mxu0 %v814
  %839 = vmatprep.subr.bf16.mxu0 0
  %840 = vmatpush1.bf16.msra.mxu0 0
  %841 = vmatprep.subr.bf16.mxu0 0
  %842 = vmatpush1.bf16.msra.mxu0 0
  %843 = vmatprep.subr.bf16.mxu0 0
  %844 = vmatpush1.bf16.msra.mxu0 0
  %845 = vmatprep.subr.bf16.mxu0 0
  %846 = vmatpush1.bf16.msra.mxu0 0
  %847 = vmatprep.subr.bf16.mxu0 0
  %848 = vmatpush1.bf16.msra.mxu0 0
  %849 = vmatprep.subr.bf16.mxu0 0
  %850 = vmatpush1.bf16.msra.mxu0 0
  %851 = vmatprep.subr.bf16.mxu0 0
  %852 = vmatpush1.bf16.msra.mxu0 0
  %853 = vmatprep.subr.bf16.mxu0 0
  %854 = vmatpush1.bf16.msra.mxu0 0
  %855 = vmatprep.mubr.bf16.mxu0 0
  %856 = vmatmul.mubr.bf16.gmra.mrb[0].mxu0 %v744
  %v857 = vpop.f32.mrb[0].mxu0
  %v858 = vadd.f32 %v773, %v857
  %v859 = vpop.f32.mrb[0].mxu0
  %v860 = vpop.f32.mrb[0].mxu0
  %v861 = vadd.f32 %v773, %v860
  %v862 = vpop.f32.mrb[0].mxu0
  %863 = vmatprep.mubr.bf16.mxu0 0
  %864 = vmatmul.mubr.bf16.gmra.mrb[0].mxu0 %v745
  %v865 = vpop.f32.mrb[0].mxu0
  %v866 = vadd.f32 %v773, %v865
  %v867 = vpop.f32.mrb[0].mxu0
  %v868 = vpop.f32.mrb[0].mxu0
  %v869 = vadd.f32 %v773, %v868
  %v870 = vpop.f32.mrb[0].mxu0
  %871 = vmatprep.mubr.bf16.mxu0 0
  %872 = vmatmul.mubr.bf16.gmra.mrb[0].mxu0 %v746
  %v873 = vpop.f32.mrb[0].mxu0
  %v874 = vadd.f32 %v773, %v873
  %v875 = vpop.f32.mrb[0].mxu0
  %v876 = vpop.f32.mrb[0].mxu0
  %v877 = vadd.f32 %v773, %v876
  %v878 = vpop.f32.mrb[0].mxu0
  %879 = vmatprep.mubr.bf16.mxu0 0
  %880 = vmatmul.mubr.bf16.gmra.mrb[0].mxu0 %v747
  %v881 = vpop.f32.mrb[0].mxu0
  %v882 = vadd.f32 %v773, %v881
  %v883 = vpop.f32.mrb[0].mxu0
  %v884 = vpop.f32.mrb[0].mxu0
  %v885 = vadd.f32 %v773, %v884
  %v886 = vpop.f32.mrb[0].mxu0
  %887 = vmatprep.mubr.bf16.mxu0 0
  %888 = vmatmul.mubr.bf16.gmra.mrb[0].mxu0 %v748
  %v889 = vpop.f32.mrb[0].mxu0
  %v890 = vadd.f32 %v773, %v889
  %v891 = vpop.f32.mrb[0].mxu0
  %v892 = vpop.f32.mrb[0].mxu0
  %v893 = vadd.f32 %v773, %v892
  %v894 = vpop.f32.mrb[0].mxu0
  %895 = vmatprep.mubr.bf16.mxu0 0
  %896 = vmatmul.mubr.bf16.gmra.mrb[0].mxu0 %v749
  %v897 = vpop.f32.mrb[0].mxu0
  %v898 = vadd.f32 %v773, %v897
  %v899 = vpop.f32.mrb[0].mxu0
  %v900 = vpop.f32.mrb[0].mxu0
  %v901 = vadd.f32 %v773, %v900
  %v902 = vpop.f32.mrb[0].mxu0
  %903 = vmatprep.mubr.bf16.mxu0 0
  %904 = vmatmul.mubr.bf16.gmra.mrb[0].mxu0 %v750
  %v905 = vpop.f32.mrb[0].mxu0
  %v906 = vadd.f32 %v773, %v905
  %v907 = vpop.f32.mrb[0].mxu0
  %v908 = vpop.f32.mrb[0].mxu0
  %v909 = vadd.f32 %v773, %v908
  %v910 = vpop.f32.mrb[0].mxu0
  %911 = vmatprep.mubr.bf16.mxu0 0
  %912 = vmatmul.mubr.bf16.gmra.mrb[0].mxu0 %v751
  %v913 = vpop.f32.mrb[0].mxu0
  %v914 = vadd.f32 %v773, %v913
  %v915 = vpop.f32.mrb[0].mxu0
  %v916 = vpop.f32.mrb[0].mxu0
  %v917 = vadd.f32 %v773, %v916
  %v918 = vpop.f32.mrb[0].mxu0
  %919 = vdwg.mxu0
  %v920 = vlaneseq
  %v921 = vand.u32 %v920, 127
  %vm922 = vcmp.lt.s32.totalorder %v921, 4
  %v923 = vsel %vm922, %v858, -1e+30
  %v924 = vsel %vm922, %v861, -1e+30
  %v925 = vsel %vm922, %v866, -1e+30
  %v926 = vsel %vm922, %v869, -1e+30
  %v927 = vsel %vm922, %v874, -1e+30
  %v928 = vsel %vm922, %v877, -1e+30
  %v929 = vsel %vm922, %v882, -1e+30
  %v930 = vsel %vm922, %v885, -1e+30
  %v931 = vsel %vm922, %v890, -1e+30
  %v932 = vsel %vm922, %v893, -1e+30
  %v933 = vsel %vm922, %v898, -1e+30
  %v934 = vsel %vm922, %v901, -1e+30
  %v935 = vsel %vm922, %v906, -1e+30
  %v936 = vsel %vm922, %v909, -1e+30
  %v937 = vsel %vm922, %v914, -1e+30
  %v938 = vsel %vm922, %v917, -1e+30
  %939 = vmax.xlane.f32.xlu0 %v923
  %v940 = vpop.xlane.xlu0 %939
  %941 = vmax.xlane.f32.xlu0 %v924
  %v942 = vpop.xlane.xlu0 %941
  %943 = vmax.xlane.f32.xlu0 %v925
  %v944 = vpop.xlane.xlu0 %943
  %945 = vmax.xlane.f32.xlu0 %v926
  %v946 = vpop.xlane.xlu0 %945
  %947 = vmax.xlane.f32.xlu0 %v927
  %v948 = vpop.xlane.xlu0 %947
  %949 = vmax.xlane.f32.xlu0 %v928
  %v950 = vpop.xlane.xlu0 %949
  %951 = vmax.xlane.f32.xlu0 %v929
  %v952 = vpop.xlane.xlu0 %951
  %953 = vmax.xlane.f32.xlu0 %v930
  %v954 = vpop.xlane.xlu0 %953
  %955 = vmax.xlane.f32.xlu0 %v931
  %v956 = vpop.xlane.xlu0 %955
  %957 = vmax.xlane.f32.xlu0 %v932
  %v958 = vpop.xlane.xlu0 %957
  %959 = vmax.xlane.f32.xlu0 %v933
  %v960 = vpop.xlane.xlu0 %959
  %961 = vmax.xlane.f32.xlu0 %v934
  %v962 = vpop.xlane.xlu0 %961
  %963 = vmax.xlane.f32.xlu0 %v935
  %v964 = vpop.xlane.xlu0 %963
  %965 = vmax.xlane.f32.xlu0 %v936
  %v966 = vpop.xlane.xlu0 %965
  %967 = vmax.xlane.f32.xlu0 %v937
  %v968 = vpop.xlane.xlu0 %967
  %969 = vmax.xlane.f32.xlu0 %v938
  %v970 = vpop.xlane.xlu0 %969
  %v971 = vsub.f32 %v923, %v940
  %v972 = vsub.f32 %v924, %v942
  %v973 = vsub.f32 %v925, %v944
  %v974 = vsub.f32 %v926, %v946
  %v975 = vsub.f32 %v927, %v948
  %v976 = vsub.f32 %v928, %v950
  %v977 = vsub.f32 %v929, %v952
  %v978 = vsub.f32 %v930, %v954
  %v979 = vsub.f32 %v931, %v956
  %v980 = vsub.f32 %v932, %v958
  %v981 = vsub.f32 %v933, %v960
  %v982 = vsub.f32 %v934, %v962
  %v983 = vsub.f32 %v935, %v964
  %v984 = vsub.f32 %v936, %v966
  %v985 = vsub.f32 %v937, %v968
  %v986 = vsub.f32 %v938, %v970
  %v987 = vmul.f32 %v971, 1.442695
  %v988 = vpow.pop %v987
  %v989 = vmul.f32 %v972, 1.442695
  %v990 = vpow.pop %v989
  %v991 = vmul.f32 %v973, 1.442695
  %v992 = vpow.pop %v991
  %v993 = vmul.f32 %v974, 1.442695
  %v994 = vpow.pop %v993
  %v995 = vmul.f32 %v975, 1.442695
  %v996 = vpow.pop %v995
  %v997 = vmul.f32 %v976, 1.442695
  %v998 = vpow.pop %v997
  %v999 = vmul.f32 %v977, 1.442695
  %v1000 = vpow.pop %v999
  %v1001 = vmul.f32 %v978, 1.442695
  %v1002 = vpow.pop %v1001
  %v1003 = vmul.f32 %v979, 1.442695
  %v1004 = vpow.pop %v1003
  %v1005 = vmul.f32 %v980, 1.442695
  %v1006 = vpow.pop %v1005
  %v1007 = vmul.f32 %v981, 1.442695
  %v1008 = vpow.pop %v1007
  %v1009 = vmul.f32 %v982, 1.442695
  %v1010 = vpow.pop %v1009
  %v1011 = vmul.f32 %v983, 1.442695
  %v1012 = vpow.pop %v1011
  %v1013 = vmul.f32 %v984, 1.442695
  %v1014 = vpow.pop %v1013
  %v1015 = vmul.f32 %v985, 1.442695
  %v1016 = vpow.pop %v1015
  %v1017 = vmul.f32 %v986, 1.442695
  %v1018 = vpow.pop %v1017
  %1019 = vadd.xlane.f32.xlu0 %v988
  %v1020 = vpop.xlane.xlu0 %1019
  %1021 = vadd.xlane.f32.xlu0 %v990
  %v1022 = vpop.xlane.xlu0 %1021
  %1023 = vadd.xlane.f32.xlu0 %v992
  %v1024 = vpop.xlane.xlu0 %1023
  %1025 = vadd.xlane.f32.xlu0 %v994
  %v1026 = vpop.xlane.xlu0 %1025
  %1027 = vadd.xlane.f32.xlu0 %v996
  %v1028 = vpop.xlane.xlu0 %1027
  %1029 = vadd.xlane.f32.xlu0 %v998
  %v1030 = vpop.xlane.xlu0 %1029
  %1031 = vadd.xlane.f32.xlu0 %v1000
  %v1032 = vpop.xlane.xlu0 %1031
  %1033 = vadd.xlane.f32.xlu0 %v1002
  %v1034 = vpop.xlane.xlu0 %1033
  %1035 = vadd.xlane.f32.xlu0 %v1004
  %v1036 = vpop.xlane.xlu0 %1035
  %1037 = vadd.xlane.f32.xlu0 %v1006
  %v1038 = vpop.xlane.xlu0 %1037
  %1039 = vadd.xlane.f32.xlu0 %v1008
  %v1040 = vpop.xlane.xlu0 %1039
  %1041 = vadd.xlane.f32.xlu0 %v1010
  %v1042 = vpop.xlane.xlu0 %1041
  %1043 = vadd.xlane.f32.xlu0 %v1012
  %v1044 = vpop.xlane.xlu0 %1043
  %1045 = vadd.xlane.f32.xlu0 %v1014
  %v1046 = vpop.xlane.xlu0 %1045
  %1047 = vadd.xlane.f32.xlu0 %v1016
  %v1048 = vpop.xlane.xlu0 %1047
  %1049 = vadd.xlane.f32.xlu0 %v1018
  %v1050 = vpop.xlane.xlu0 %1049
  %v1051 = vrcp.pop %v1020
  %v1052 = vrcp.pop %v1022
  %v1053 = vrcp.pop %v1024
  %v1054 = vrcp.pop %v1026
  %v1055 = vrcp.pop %v1028
  %v1056 = vrcp.pop %v1030
  %v1057 = vrcp.pop %v1032
  %v1058 = vrcp.pop %v1034
  %v1059 = vrcp.pop %v1036
  %v1060 = vrcp.pop %v1038
  %v1061 = vrcp.pop %v1040
  %v1062 = vrcp.pop %v1042
  %v1063 = vrcp.pop %v1044
  %v1064 = vrcp.pop %v1046
  %v1065 = vrcp.pop %v1048
  %v1066 = vrcp.pop %v1050
  %v1067 = vmul.f32 %v988, %v1051
  %v1068 = vmul.f32 %v990, %v1052
  %v1069 = vmul.f32 %v992, %v1053
  %v1070 = vmul.f32 %v994, %v1054
  %v1071 = vmul.f32 %v996, %v1055
  %v1072 = vmul.f32 %v998, %v1056
  %v1073 = vmul.f32 %v1000, %v1057
  %v1074 = vmul.f32 %v1002, %v1058
  %v1075 = vmul.f32 %v1004, %v1059
  %v1076 = vmul.f32 %v1006, %v1060
  %v1077 = vmul.f32 %v1008, %v1061
  %v1078 = vmul.f32 %v1010, %v1062
  %v1079 = vmul.f32 %v1012, %v1063
  %v1080 = vmul.f32 %v1014, %v1064
  %v1081 = vmul.f32 %v1016, %v1065
  %v1082 = vmul.f32 %v1018, %v1066
  %1083 = vst [vmem:[%s8] sm:$0xff] %v1067
  %1084 = vst [vmem:[%s8 + $0x8] sm:$0xff] %v1068
  %1085 = vst [vmem:[%s8 + $0x10] sm:$0xff] %v1069
  %1086 = vst [vmem:[%s8 + $0x18] sm:$0xff] %v1070
  %1087 = vst [vmem:[%s8 + $0x20] sm:$0xff] %v1071
  %1088 = vst [vmem:[%s8 + $0x28] sm:$0xff] %v1072
  %1089 = vst [vmem:[%s8 + $0x30] sm:$0xff] %v1073
  %1090 = vst [vmem:[%s8 + $0x38] sm:$0xff] %v1074
  %1091 = vst [vmem:[%s8 + $0x40] sm:$0xff] %v1075
  %1092 = vst [vmem:[%s8 + $0x48] sm:$0xff] %v1076
  %1093 = vst [vmem:[%s8 + $0x50] sm:$0xff] %v1077
  %1094 = vst [vmem:[%s8 + $0x58] sm:$0xff] %v1078
  %1095 = vst [vmem:[%s8 + $0x60] sm:$0xff] %v1079
  %1096 = vst [vmem:[%s8 + $0x68] sm:$0xff] %v1080
  %1097 = vst [vmem:[%s8 + $0x70] sm:$0xff] %v1081
  %1098 = vst [vmem:[%s8 + $0x78] sm:$0xff] %v1082
  // Predicated region
  $region34: #{net_forward.1} parent=0 // pred_check
    _
  $region35: #{net_forward.1} parent=0 // pred_check_branch
    %1100 = sbr.rel (0) target = $region37
  $region36: #{net_forward.1} parent=0 // pred_region
    _
  $region37: #{net_forward.1} parent=0 // pred_fallthru
    _
  // Predicated region
  $region38: #{net_forward.1} parent=0 // pred_check
    _
  $region39: #{net_forward.1} parent=0 // pred_check_branch
    %1102 = sbr.rel (0) target = $region41
  $region40: #{net_forward.1} parent=0 // pred_region
    _
  $region41: #{net_forward.1} parent=0 // pred_fallthru
    _

</llo_original>
